<compile_context>
chip_gen: v7x
topology: tpu7x:2x2x1
jax: 0.10.0
libtpu: 0.0.40
codegen_flags: <defaults>
</compile_context>

<pallas_src>
import functools
import math

import jax
import jax.numpy as jnp
from jax.experimental import pallas as pl
from jax.experimental.pallas import tpu as pltpu

_LANE = 128          # TPU vreg lane width
_MAX_TILE_M = 1024   # absolute cap on batch tile rows


def _round_up(x, m):
    return ((x + m - 1) // m) * m


def _row_align(dtype):
    """Sublane row alignment for partial batch tiles (8 f32 / 16 bf16 / 32 i8)."""
    return max(8, 32 // jnp.dtype(dtype).itemsize)


def _apply_activation(y, activation):
    if activation == "relu":
        return jnp.maximum(y, 0.0)
    if activation == "tanh":
        return jnp.tanh(y)
    if activation == "sigmoid":
        return jax.nn.sigmoid(y)
    return y  # identity / None


def _fused_mlp_kernel(*refs, n_layers, activation, bias_offsets):
    """Whole-MLP kernel body.

    refs = (x_ref, w0_ref, ..., w{L-1}_ref, bias_cat_ref, out_ref)
      x_ref:      [tile_m, D0_p]
      wK_ref:     [Dk_p, Dk+1_p]         (all dims 128-multiples)
      bias_cat:   [1, sum(Dk+1_p)]
      out_ref:    [tile_m, D_last_p]
    Intermediate activations stay on-chip; only the final result is stored.
    """
    x_ref = refs[0]
    w_refs = refs[1:1 + n_layers]
    bias_ref = refs[1 + n_layers]
    out_ref = refs[2 + n_layers]

    h = x_ref[...]                    # keep MXU operands in the input dtype
    compute_dtype = h.dtype
    for i in range(n_layers):
        off, width = bias_offsets[i]
        w = w_refs[i][...]
        b = bias_ref[:, off:off + width].astype(jnp.float32)
        acc = jnp.dot(h, w, preferred_element_type=jnp.float32) + b
        if i < n_layers - 1:          # no activation after the final Linear
            acc = _apply_activation(acc, activation)
        h = acc.astype(compute_dtype)
    out_ref[...] = h.astype(out_ref.dtype)


def mlp_forward(x, params, activation):
    """Run the whole MLP in one pallas_call.

    params: list of (W [in, out], b [out]) per layer, in order.
    """
    batch, d_in = x.shape
    n_layers = len(params)
    d_out = params[-1][0].shape[1]
    bpe = jnp.dtype(x.dtype).itemsize
    p_bpe = jnp.dtype(params[0][0].dtype).itemsize
    row_align = _row_align(x.dtype)

    # ---- pad every feature dim (input, hidden, output) to a lane multiple ----
    dims = [d_in] + [w.shape[1] for w, _ in params]
    dims_p = [_round_up(d, _LANE) for d in dims]
    d0_p, dlast_p = dims_p[0], dims_p[-1]
    max_d_p = max(dims_p)

    x_p = x if d0_p == d_in else jnp.pad(x, ((0, 0), (0, d0_p - d_in)))

    w_list, b_list, bias_offsets = [], [], []
    total_bias = 0
    for li, (w, b) in enumerate(params):
        din_p, dout_p = dims_p[li], dims_p[li + 1]
        w_p = jnp.pad(w, ((0, din_p - w.shape[0]), (0, dout_p - w.shape[1])))
        b_p = jnp.pad(b, (0, dout_p - b.shape[0]))
        w_list.append(w_p)
        b_list.append(b_p)
        bias_offsets.append((total_bias, dout_p))
        total_bias += dout_p
    bias_cat = jnp.concatenate(b_list).reshape(1, total_bias)
    bias_offsets = tuple(bias_offsets)

    # ---- generation-aware VMEM budget -> batch tile ----
    try:
        vmem_cap = pltpu.get_tpu_info().vmem_capacity_bytes
    except Exception:
        vmem_cap = 64 * 1024 * 1024          # conservative (v7x per-TC)
    budget = int(vmem_cap * 0.75)

    weight_bytes = sum(w.size * p_bpe for w in w_list)
    resident = 2 * weight_bytes + 2 * 8 * total_bias * p_bpe   # double-buffered
    # per-row cost: in/out tiles (double-buffered) + f32 `h` temporaries
    per_row = (2 * d0_p + 2 * dlast_p) * bpe + 2 * max_d_p * 4

    tile_cap = max(row_align, (budget - resident) // max(per_row, 1))
    tile_cap = min(_MAX_TILE_M, (tile_cap // row_align) * row_align)
    # TODO(synk): weights that exceed the VMEM budget would need a tiled-weight
    # (K/N-blocked, emit_pipeline) path; not needed at these shapes.

    if batch <= tile_cap:
        if batch >= 2 * row_align:
            # force >=2 grid steps so v7x's two TensorCores both get work
            tile_m = _round_up((batch + 1) // 2, row_align)
        else:
            tile_m = _round_up(batch, row_align)
    else:
        tile_m = tile_cap

    batch_p = _round_up(batch, tile_m)
    if batch_p != batch:
        x_p = jnp.pad(x_p, ((0, batch_p - batch), (0, 0)))
    grid = (batch_p // tile_m,)

    # ---- BlockSpecs: x / out tiled over batch; weights & biases resident ----
    in_specs = [pl.BlockSpec((tile_m, d0_p), lambda i: (i, 0))]
    flat_args = [x_p]
    for li in range(n_layers):
        din_p, dout_p = dims_p[li], dims_p[li + 1]
        in_specs.append(pl.BlockSpec((din_p, dout_p), lambda i: (0, 0)))
        flat_args.append(w_list[li])
    in_specs.append(pl.BlockSpec((1, total_bias), lambda i: (0, 0)))
    flat_args.append(bias_cat)

    out_spec = pl.BlockSpec((tile_m, dlast_p), lambda i: (i, 0))

    # ---- explicit VMEM limit + cost estimate ----
    est_vmem = (resident
                + 2 * tile_m * (d0_p + dlast_p) * bpe
                + 2 * tile_m * max_d_p * 4)
    vmem_limit = int(min(budget, max(est_vmem + (2 << 20), 16 << 20)))

    flops = 2 * batch_p * sum(dims_p[i] * dims_p[i + 1] for i in range(n_layers))
    transcendentals = 0
    if activation in ("tanh", "sigmoid"):
        transcendentals = batch_p * sum(dims_p[1:-1])
    bytes_accessed = (x_p.size * bpe + batch_p * dlast_p * bpe
                      + weight_bytes + bias_cat.size * p_bpe)

    kernel = functools.partial(
        _fused_mlp_kernel, n_layers=n_layers, activation=activation,
        bias_offsets=bias_offsets,
    )

    out = pl.pallas_call(
        kernel,
        out_shape=jax.ShapeDtypeStruct((batch_p, dlast_p), x.dtype),
        grid=grid,
        in_specs=in_specs,
        out_specs=out_spec,
        compiler_params=pltpu.CompilerParams(
            dimension_semantics=("parallel",),   # batch tiles are independent
            vmem_limit_bytes=vmem_limit,
        ),
        cost_estimate=pl.CostEstimate(
            flops=flops,
            transcendentals=transcendentals,
            bytes_accessed=bytes_accessed,
        ),
    )(*flat_args)

    return out[:batch, :d_out]


class MLPPallas:
    """Mirror of the PyTorch MLP: Linear layers with an activation between
    every pair of consecutive Linear layers (none after the last one)."""

    def __init__(self, layers, activation, key, dtype=jnp.float32):
        self.activation = activation
        self.params = []
        for i in range(len(layers) - 1):
            fan_in, fan_out = layers[i], layers[i + 1]
            key, kw, kb = jax.random.split(key, 3)
            bound = 1.0 / math.sqrt(fan_in)
            # Store W as [in, out] (transposed vs torch nn.Linear's [out, in]).
            w = jax.random.uniform(kw, (fan_in, fan_out), dtype, -bound, bound)
            b = jax.random.uniform(kb, (fan_out,), dtype, -bound, bound)
            self.params.append((w, b))

        act = activation
        # jit so the padding/slice plumbing folds around the single pallas_call
        self._fwd = jax.jit(lambda xx, pp: mlp_forward(xx, pp, act))

    def __call__(self, x):
        return self._fwd(x, self.params)


if __name__ == "__main__":
    key = jax.random.PRNGKey(0)

    # Small shapes consistent with the module: layers = [32, 64, 64, 16]
    layers = [32, 64, 64, 16]
    activation = "tanh"
    batch = 8

    key, kx, kp = jax.random.split(key, 3)
    x = jax.random.normal(kx, (batch, layers[0]), jnp.float32)

    mlp = MLPPallas(layers, activation, kp)
    out = mlp(x)
    out = jax.block_until_ready(out)

    # Pure-JAX reference for sanity.
    ref = x
    for i, (w, b) in enumerate(mlp.params):
        ref = ref @ w + b
        if i < len(mlp.params) - 1:
            ref = jnp.tanh(ref)

    assert out.shape == (batch, layers[-1])
    assert jnp.allclose(out, ref, atol=1e-5, rtol=1e-5)

    print("KERNEL_OK")
</pallas_src>

<mosaic_0001>
module attributes {stable_mosaic.version = 11 : i64} {
  func.func @_fused_mlp_kernel(%arg0: i32, %arg1: memref<8x128xf32, #tpu.memory_space<vmem>>, %arg2: memref<128x128xf32, #tpu.memory_space<vmem>>, %arg3: memref<128x128xf32, #tpu.memory_space<vmem>>, %arg4: memref<128x128xf32, #tpu.memory_space<vmem>>, %arg5: memref<1x384xf32, #tpu.memory_space<vmem>>, %arg6: memref<8x128xf32, #tpu.memory_space<vmem>>) attributes {dimension_semantics = [#tpu.dimension_semantics<parallel>], iteration_bounds = array<i64: 1>, scalar_prefetch = 0 : i64, scratch_operands = 0 : i64, tpu.core_type = #tpu.core_type<tc>, window_params = [{transform_indices = @transform_0, window_bounds = array<i64: 8, 128>}, {pipeline_mode = #tpu.pipeline_mode<synchronous>, transform_indices = @transform_1, window_bounds = array<i64: 128, 128>}, {pipeline_mode = #tpu.pipeline_mode<synchronous>, transform_indices = @transform_2, window_bounds = array<i64: 128, 128>}, {pipeline_mode = #tpu.pipeline_mode<synchronous>, transform_indices = @transform_3, window_bounds = array<i64: 128, 128>}, {pipeline_mode = #tpu.pipeline_mode<synchronous>, transform_indices = @transform_4, window_bounds = array<i64: 1, 384>}, {transform_indices = @transform_5, window_bounds = array<i64: 8, 128>}]} {
    %c0 = arith.constant 0 : index
    %c0_0 = arith.constant 0 : index
    %0 = vector.load %arg1[%c0, %c0_0] : memref<8x128xf32, #tpu.memory_space<vmem>>, vector<8x128xf32>
    %c0_1 = arith.constant 0 : index
    %c0_2 = arith.constant 0 : index
    %1 = vector.load %arg2[%c0_1, %c0_2] : memref<128x128xf32, #tpu.memory_space<vmem>>, vector<128x128xf32>
    %c0_3 = arith.constant 0 : index
    %c0_4 = arith.constant 0 : index
    %2 = vector.load %arg5[%c0_3, %c0_4] : memref<1x384xf32, #tpu.memory_space<vmem>>, vector<1x128xf32>
    %cst = arith.constant dense<0.000000e+00> : vector<8x128xf32>
    %3 = tpu.matmul %0, %1, %cst {dimension_numbers = #tpu.dot_dimension_numbers<[1], [0], [0], [1], [0, 0, 1, 1], [], []>} : vector<8x128xf32>, vector<128x128xf32>, vector<8x128xf32> -> vector<8x128xf32>
    %4 = vector.broadcast %2 : vector<1x128xf32> to vector<8x128xf32>
    %5 = arith.addf %3, %4 : vector<8x128xf32>
    %6 = math.tanh %5 : vector<8x128xf32>
    %c0_5 = arith.constant 0 : index
    %c0_6 = arith.constant 0 : index
    %7 = vector.load %arg3[%c0_5, %c0_6] : memref<128x128xf32, #tpu.memory_space<vmem>>, vector<128x128xf32>
    %c0_7 = arith.constant 0 : index
    %c128 = arith.constant 128 : index
    %8 = vector.load %arg5[%c0_7, %c128] : memref<1x384xf32, #tpu.memory_space<vmem>>, vector<1x128xf32>
    %cst_8 = arith.constant dense<0.000000e+00> : vector<8x128xf32>
    %9 = tpu.matmul %6, %7, %cst_8 {dimension_numbers = #tpu.dot_dimension_numbers<[1], [0], [0], [1], [0, 0, 1, 1], [], []>} : vector<8x128xf32>, vector<128x128xf32>, vector<8x128xf32> -> vector<8x128xf32>
    %10 = vector.broadcast %8 : vector<1x128xf32> to vector<8x128xf32>
    %11 = arith.addf %9, %10 : vector<8x128xf32>
    %12 = math.tanh %11 : vector<8x128xf32>
    %c0_9 = arith.constant 0 : index
    %c0_10 = arith.constant 0 : index
    %13 = vector.load %arg4[%c0_9, %c0_10] : memref<128x128xf32, #tpu.memory_space<vmem>>, vector<128x128xf32>
    %c0_11 = arith.constant 0 : index
    %c256 = arith.constant 256 : index
    %14 = vector.load %arg5[%c0_11, %c256] : memref<1x384xf32, #tpu.memory_space<vmem>>, vector<1x128xf32>
    %cst_12 = arith.constant dense<0.000000e+00> : vector<8x128xf32>
    %15 = tpu.matmul %12, %13, %cst_12 {dimension_numbers = #tpu.dot_dimension_numbers<[1], [0], [0], [1], [0, 0, 1, 1], [], []>} : vector<8x128xf32>, vector<128x128xf32>, vector<8x128xf32> -> vector<8x128xf32>
    %16 = vector.broadcast %14 : vector<1x128xf32> to vector<8x128xf32>
    %17 = arith.addf %15, %16 : vector<8x128xf32>
    %c0_13 = arith.constant 0 : index
    %c0_14 = arith.constant 0 : index
    %18 = vector.load %arg6[%c0_13, %c0_14] : memref<8x128xf32, #tpu.memory_space<vmem>>, vector<8x128xf32>
    tpu.vector_store %arg6[%c0_13, %c0_14], %17 {strides = array<i32>} : memref<8x128xf32, #tpu.memory_space<vmem>>, vector<8x128xf32>,
    return
  }
  func.func @transform_0(%arg0: i32) -> (i32, i32) {
    %c0_i32 = arith.constant 0 : i32
    %c0_i32_0 = arith.constant 0 : i32
    return %arg0, %c0_i32 : i32, i32
  }
  func.func @transform_1(%arg0: i32) -> (i32, i32) {
    %c0_i32 = arith.constant 0 : i32
    %c0_i32_0 = arith.constant 0 : i32
    %c0_i32_1 = arith.constant 0 : i32
    return %c0_i32, %c0_i32_0 : i32, i32
  }
  func.func @transform_2(%arg0: i32) -> (i32, i32) {
    %c0_i32 = arith.constant 0 : i32
    %c0_i32_0 = arith.constant 0 : i32
    %c0_i32_1 = arith.constant 0 : i32
    return %c0_i32, %c0_i32_0 : i32, i32
  }
  func.func @transform_3(%arg0: i32) -> (i32, i32) {
    %c0_i32 = arith.constant 0 : i32
    %c0_i32_0 = arith.constant 0 : i32
    %c0_i32_1 = arith.constant 0 : i32
    return %c0_i32, %c0_i32_0 : i32, i32
  }
  func.func @transform_4(%arg0: i32) -> (i32, i32) {
    %c0_i32 = arith.constant 0 : i32
    %c0_i32_0 = arith.constant 0 : i32
    %c0_i32_1 = arith.constant 0 : i32
    return %c0_i32, %c0_i32_0 : i32, i32
  }
  func.func @transform_5(%arg0: i32) -> (i32, i32) {
    %c0_i32 = arith.constant 0 : i32
    %c0_i32_0 = arith.constant 0 : i32
    return %arg0, %c0_i32 : i32, i32
  }
}

</mosaic_0001>

<llo_original>
// kernel: _lambda_.1
$region0: #{_lambda_.1}
  #allocation0 [shape = 'u32[]', space=smem, size = 0x4, offset = 0x4, fixed_abs, tag = 'smem constant byte address 0x4 - core index']
  #allocation1 [shape = 'u32[144,128]{1,0:T(1,128)}', space=vmem, size = 0x12000, scoped, tag = 'internal scratch']
  %s0 = inlined_call_operand.vmem [shape: f32[8,128], index: 0, kind: input, shape index: {}]
  %s1 = inlined_call_operand.vmem [shape: f32[128,128], index: 1, kind: input, shape index: {}]
  %s2 = inlined_call_operand.vmem [shape: f32[128,128], index: 2, kind: input, shape index: {}]
  %s3 = inlined_call_operand.vmem [shape: f32[128,128], index: 3, kind: input, shape index: {}]
  %s4 = inlined_call_operand.vmem [shape: f32[1,384], index: 4, kind: input, shape index: {}]
  %s5 = inlined_call_operand.hbm [shape: f32[8,128], index: 5, kind: output, shape index: {}]
  %s6 = sld [smem:[#allocation0]]
  $region30: #{_lambda_.1} parent=0
    _
  %s8 = ssub.s32 1, %s6
  %s9 = scalar_select 0, %s8, %s6
  $region1: #{_lambda_.1} parent=0
    #allocation2 [shape = 'u8[4096]{0}', space=vmem, size = 0x1000, scoped, tag = 'output window, operand 0, single buffered']
    #allocation3 [shape = 's32[1]{0}', space=sflag, size = 0x4, scoped, tag = 'scoped memory for _lambda_.1']
    %10 = vsyncpa [#allocation3], 0
    // Predicated region
    $region2: #{_lambda_.1} parent=1 // pred_check
      _
    $region3: #{_lambda_.1} parent=1 // pred_check_branch
      %12 = sbr.rel (0) target = $region5
    $region4: #{_lambda_.1} parent=1 // pred_region
      _
    $region5: #{_lambda_.1} parent=1 // pred_fallthru
      _
    // Predicated region
    $region6: #{_lambda_.1} parent=1 // pred_check
      _
    $region7: #{_lambda_.1} parent=1 // pred_check_branch
      %14 = sbr.rel (0) target = $region9
    $region8: #{_lambda_.1} parent=1 // pred_region
      _
    $region9: #{_lambda_.1} parent=1 // pred_fallthru
      _
    // Predicated region
    $region10: #{_lambda_.1} parent=1 // pred_check
      _
    $region11: #{_lambda_.1} parent=1 // pred_check_branch
      %16 = sbr.rel (0) target = $region13
    $region12: #{_lambda_.1} parent=1 // pred_region
      _
    $region13: #{_lambda_.1} parent=1 // pred_fallthru
      _
    // Predicated region
    $region14: #{_lambda_.1} parent=1 // pred_check
      _
    $region15: #{_lambda_.1} parent=1 // pred_check_branch
      %18 = sbr.rel (0) target = $region17
    $region16: #{_lambda_.1} parent=1 // pred_region
      _
    $region17: #{_lambda_.1} parent=1 // pred_fallthru
      _
    // Predicated region
    $region18: #{_lambda_.1} parent=1 // pred_check
      _
    $region19: #{_lambda_.1} parent=1 // pred_check_branch
      %20 = sbr.rel (0) target = $region21
    $region20: #{_lambda_.1} parent=1 // pred_region
      _
    $region21: #{_lambda_.1} parent=1 // pred_fallthru
      _
    %v21 = vld [vmem:[%s0] sm:$0xff]
    %v22 = vld [vmem:[%s1] sm:$0xff]
    %v23 = vld [vmem:[%s1 + $0x8] sm:$0xff]
    %v24 = vld [vmem:[%s1 + $0x10] sm:$0xff]
    %v25 = vld [vmem:[%s1 + $0x18] sm:$0xff]
    %v26 = vld [vmem:[%s1 + $0x20] sm:$0xff]
    %v27 = vld [vmem:[%s1 + $0x28] sm:$0xff]
    %v28 = vld [vmem:[%s1 + $0x30] sm:$0xff]
    %v29 = vld [vmem:[%s1 + $0x38] sm:$0xff]
    %v30 = vld [vmem:[%s1 + $0x40] sm:$0xff]
    %v31 = vld [vmem:[%s1 + $0x48] sm:$0xff]
    %v32 = vld [vmem:[%s1 + $0x50] sm:$0xff]
    %v33 = vld [vmem:[%s1 + $0x58] sm:$0xff]
    %v34 = vld [vmem:[%s1 + $0x60] sm:$0xff]
    %v35 = vld [vmem:[%s1 + $0x68] sm:$0xff]
    %v36 = vld [vmem:[%s1 + $0x70] sm:$0xff]
    %v37 = vld [vmem:[%s1 + $0x78] sm:$0xff]
    %v38 = vld [vmem:[%s4] sm:$0x1]
    %v40 = vlaneseq
    %v41 = vshrl.u32 %v40, 7
    %v42 = vsub.s32 0, %v41
    %v43 = vrot.slane %v38, %v42
    %45 = vmatprep.subr.mxu0 0.0
    %46 = vmatpush1.msra.mxu0 %v22
    %47 = vmatprep.subr.mxu0 0.0
    %48 = vmatpush1.msra.mxu0 %v23
    %49 = vmatprep.subr.mxu0 0.0
    %50 = vmatpush1.msra.mxu0 %v24
    %51 = vmatprep.subr.mxu0 0.0
    %52 = vmatpush1.msra.mxu0 %v25
    %53 = vmatprep.subr.mxu0 0.0
    %54 = vmatpush1.msra.mxu0 %v26
    %55 = vmatprep.subr.mxu0 0.0
    %56 = vmatpush1.msra.mxu0 %v27
    %57 = vmatprep.subr.mxu0 0.0
    %58 = vmatpush1.msra.mxu0 %v28
    %59 = vmatprep.subr.mxu0 0.0
    %60 = vmatpush1.msra.mxu0 %v29
    %61 = vmatprep.subr.mxu0 0.0
    %62 = vmatpush1.msra.mxu0 %v30
    %63 = vmatprep.subr.mxu0 0.0
    %64 = vmatpush1.msra.mxu0 %v31
    %65 = vmatprep.subr.mxu0 0.0
    %66 = vmatpush1.msra.mxu0 %v32
    %67 = vmatprep.subr.mxu0 0.0
    %68 = vmatpush1.msra.mxu0 %v33
    %69 = vmatprep.subr.mxu0 0.0
    %70 = vmatpush1.msra.mxu0 %v34
    %71 = vmatprep.subr.mxu0 0.0
    %72 = vmatpush1.msra.mxu0 %v35
    %73 = vmatprep.subr.mxu0 0.0
    %74 = vmatpush1.msra.mxu0 %v36
    %75 = vmatprep.subr.mxu0 0.0
    %76 = vmatpush1.msra.mxu0 %v37
    %77 = vmatprep.subr.mxu0 0.0
    %78 = vmatpush1.msra.mxu0 0.0
    %79 = vmatprep.subr.mxu0 0.0
    %80 = vmatpush1.msra.mxu0 0.0
    %81 = vmatprep.subr.mxu0 0.0
    %82 = vmatpush1.msra.mxu0 0.0
    %83 = vmatprep.subr.mxu0 0.0
    %84 = vmatpush1.msra.mxu0 0.0
    %85 = vmatprep.subr.mxu0 0.0
    %86 = vmatpush1.msra.mxu0 0.0
    %87 = vmatprep.subr.mxu0 0.0
    %88 = vmatpush1.msra.mxu0 0.0
    %89 = vmatprep.subr.mxu0 0.0
    %90 = vmatpush1.msra.mxu0 0.0
    %91 = vmatprep.subr.mxu0 0.0
    %92 = vmatpush1.msra.mxu0 0.0
    %93 = vmatprep.subr.mxu0 0.0
    %94 = vmatpush1.msra.mxu0 0.0
    %95 = vmatprep.subr.mxu0 0.0
    %96 = vmatpush1.msra.mxu0 0.0
    %97 = vmatprep.subr.mxu0 0.0
    %98 = vmatpush1.msra.mxu0 0.0
    %99 = vmatprep.subr.mxu0 0.0
    %100 = vmatpush1.msra.mxu0 0.0
    %101 = vmatprep.subr.mxu0 0.0
    %102 = vmatpush1.msra.mxu0 0.0
    %103 = vmatprep.subr.mxu0 0.0
    %104 = vmatpush1.msra.mxu0 0.0
    %105 = vmatprep.subr.mxu0 0.0
    %106 = vmatpush1.msra.mxu0 0.0
    %107 = vmatprep.subr.mxu0 0.0
    %108 = vmatpush1.msra.mxu0 0.0
    %109 = vmatprep.mubr.f32.mxu0 0.0
    %110 = vmatmul.mubr.f32.gmra.mrb[0].mxu0 %v21
    %v111 = vpop.f32.mrb[0].mxu0
    %v112 = vadd.f32 %v43, %v111
    %v113 = vpop.f32.mrb[0].mxu0
    %114 = vdwg.mxu0
    %v115 = vtanh.pop %v112
    %v116 = vld [vmem:[%s2] sm:$0xff]
    %v117 = vld [vmem:[%s2 + $0x8] sm:$0xff]
    %v118 = vld [vmem:[%s2 + $0x10] sm:$0xff]
    %v119 = vld [vmem:[%s2 + $0x18] sm:$0xff]
    %v120 = vld [vmem:[%s2 + $0x20] sm:$0xff]
    %v121 = vld [vmem:[%s2 + $0x28] sm:$0xff]
    %v122 = vld [vmem:[%s2 + $0x30] sm:$0xff]
    %v123 = vld [vmem:[%s2 + $0x38] sm:$0xff]
    %v124 = vld [vmem:[%s2 + $0x40] sm:$0xff]
    %v125 = vld [vmem:[%s2 + $0x48] sm:$0xff]
    %v126 = vld [vmem:[%s2 + $0x50] sm:$0xff]
    %v127 = vld [vmem:[%s2 + $0x58] sm:$0xff]
    %v128 = vld [vmem:[%s2 + $0x60] sm:$0xff]
    %v129 = vld [vmem:[%s2 + $0x68] sm:$0xff]
    %v130 = vld [vmem:[%s2 + $0x70] sm:$0xff]
    %v131 = vld [vmem:[%s2 + $0x78] sm:$0xff]
    %v132 = vld [vmem:[%s4 + $0x1] sm:$0x1]
    %v134 = vlaneseq
    %v135 = vshrl.u32 %v134, 7
    %v136 = vsub.s32 0, %v135
    %v137 = vrot.slane %v132, %v136
    %139 = vmatprep.subr.mxu0 0.0
    %140 = vmatpush1.msra.mxu0 %v116
    %141 = vmatprep.subr.mxu0 0.0
    %142 = vmatpush1.msra.mxu0 %v117
    %143 = vmatprep.subr.mxu0 0.0
    %144 = vmatpush1.msra.mxu0 %v118
    %145 = vmatprep.subr.mxu0 0.0
    %146 = vmatpush1.msra.mxu0 %v119
    %147 = vmatprep.subr.mxu0 0.0
    %148 = vmatpush1.msra.mxu0 %v120
    %149 = vmatprep.subr.mxu0 0.0
    %150 = vmatpush1.msra.mxu0 %v121
    %151 = vmatprep.subr.mxu0 0.0
    %152 = vmatpush1.msra.mxu0 %v122
    %153 = vmatprep.subr.mxu0 0.0
    %154 = vmatpush1.msra.mxu0 %v123
    %155 = vmatprep.subr.mxu0 0.0
    %156 = vmatpush1.msra.mxu0 %v124
    %157 = vmatprep.subr.mxu0 0.0
    %158 = vmatpush1.msra.mxu0 %v125
    %159 = vmatprep.subr.mxu0 0.0
    %160 = vmatpush1.msra.mxu0 %v126
    %161 = vmatprep.subr.mxu0 0.0
    %162 = vmatpush1.msra.mxu0 %v127
    %163 = vmatprep.subr.mxu0 0.0
    %164 = vmatpush1.msra.mxu0 %v128
    %165 = vmatprep.subr.mxu0 0.0
    %166 = vmatpush1.msra.mxu0 %v129
    %167 = vmatprep.subr.mxu0 0.0
    %168 = vmatpush1.msra.mxu0 %v130
    %169 = vmatprep.subr.mxu0 0.0
    %170 = vmatpush1.msra.mxu0 %v131
    %171 = vmatprep.subr.mxu0 0.0
    %172 = vmatpush1.msra.mxu0 0.0
    %173 = vmatprep.subr.mxu0 0.0
    %174 = vmatpush1.msra.mxu0 0.0
    %175 = vmatprep.subr.mxu0 0.0
    %176 = vmatpush1.msra.mxu0 0.0
    %177 = vmatprep.subr.mxu0 0.0
    %178 = vmatpush1.msra.mxu0 0.0
    %179 = vmatprep.subr.mxu0 0.0
    %180 = vmatpush1.msra.mxu0 0.0
    %181 = vmatprep.subr.mxu0 0.0
    %182 = vmatpush1.msra.mxu0 0.0
    %183 = vmatprep.subr.mxu0 0.0
    %184 = vmatpush1.msra.mxu0 0.0
    %185 = vmatprep.subr.mxu0 0.0
    %186 = vmatpush1.msra.mxu0 0.0
    %187 = vmatprep.subr.mxu0 0.0
    %188 = vmatpush1.msra.mxu0 0.0
    %189 = vmatprep.subr.mxu0 0.0
    %190 = vmatpush1.msra.mxu0 0.0
    %191 = vmatprep.subr.mxu0 0.0
    %192 = vmatpush1.msra.mxu0 0.0
    %193 = vmatprep.subr.mxu0 0.0
    %194 = vmatpush1.msra.mxu0 0.0
    %195 = vmatprep.subr.mxu0 0.0
    %196 = vmatpush1.msra.mxu0 0.0
    %197 = vmatprep.subr.mxu0 0.0
    %198 = vmatpush1.msra.mxu0 0.0
    %199 = vmatprep.subr.mxu0 0.0
    %200 = vmatpush1.msra.mxu0 0.0
    %201 = vmatprep.subr.mxu0 0.0
    %202 = vmatpush1.msra.mxu0 0.0
    %203 = vmatprep.mubr.f32.mxu0 0.0
    %204 = vmatmul.mubr.f32.gmra.mrb[0].mxu0 %v115
    %v205 = vpop.f32.mrb[0].mxu0
    %v206 = vadd.f32 %v137, %v205
    %v207 = vpop.f32.mrb[0].mxu0
    %208 = vdwg.mxu0
    %v209 = vtanh.pop %v206
    %v210 = vld [vmem:[%s3] sm:$0xff]
    %v211 = vld [vmem:[%s3 + $0x8] sm:$0xff]
    %v212 = vld [vmem:[%s3 + $0x10] sm:$0xff]
    %v213 = vld [vmem:[%s3 + $0x18] sm:$0xff]
    %v214 = vld [vmem:[%s3 + $0x20] sm:$0xff]
    %v215 = vld [vmem:[%s3 + $0x28] sm:$0xff]
    %v216 = vld [vmem:[%s3 + $0x30] sm:$0xff]
    %v217 = vld [vmem:[%s3 + $0x38] sm:$0xff]
    %v218 = vld [vmem:[%s3 + $0x40] sm:$0xff]
    %v219 = vld [vmem:[%s3 + $0x48] sm:$0xff]
    %v220 = vld [vmem:[%s3 + $0x50] sm:$0xff]
    %v221 = vld [vmem:[%s3 + $0x58] sm:$0xff]
    %v222 = vld [vmem:[%s3 + $0x60] sm:$0xff]
    %v223 = vld [vmem:[%s3 + $0x68] sm:$0xff]
    %v224 = vld [vmem:[%s3 + $0x70] sm:$0xff]
    %v225 = vld [vmem:[%s3 + $0x78] sm:$0xff]
    %v226 = vld [vmem:[%s4 + $0x2] sm:$0x1]
    %v228 = vlaneseq
    %v229 = vshrl.u32 %v228, 7
    %v230 = vsub.s32 0, %v229
    %v231 = vrot.slane %v226, %v230
    %233 = vmatprep.subr.mxu0 0.0
    %234 = vmatpush1.msra.mxu0 %v210
    %235 = vmatprep.subr.mxu0 0.0
    %236 = vmatpush1.msra.mxu0 %v211
    %237 = vmatprep.subr.mxu0 0.0
    %238 = vmatpush1.msra.mxu0 %v212
    %239 = vmatprep.subr.mxu0 0.0
    %240 = vmatpush1.msra.mxu0 %v213
    %241 = vmatprep.subr.mxu0 0.0
    %242 = vmatpush1.msra.mxu0 %v214
    %243 = vmatprep.subr.mxu0 0.0
    %244 = vmatpush1.msra.mxu0 %v215
    %245 = vmatprep.subr.mxu0 0.0
    %246 = vmatpush1.msra.mxu0 %v216
    %247 = vmatprep.subr.mxu0 0.0
    %248 = vmatpush1.msra.mxu0 %v217
    %249 = vmatprep.subr.mxu0 0.0
    %250 = vmatpush1.msra.mxu0 %v218
    %251 = vmatprep.subr.mxu0 0.0
    %252 = vmatpush1.msra.mxu0 %v219
    %253 = vmatprep.subr.mxu0 0.0
    %254 = vmatpush1.msra.mxu0 %v220
    %255 = vmatprep.subr.mxu0 0.0
    %256 = vmatpush1.msra.mxu0 %v221
    %257 = vmatprep.subr.mxu0 0.0
    %258 = vmatpush1.msra.mxu0 %v222
    %259 = vmatprep.subr.mxu0 0.0
    %260 = vmatpush1.msra.mxu0 %v223
    %261 = vmatprep.subr.mxu0 0.0
    %262 = vmatpush1.msra.mxu0 %v224
    %263 = vmatprep.subr.mxu0 0.0
    %264 = vmatpush1.msra.mxu0 %v225
    %265 = vmatprep.subr.mxu0 0.0
    %266 = vmatpush1.msra.mxu0 0.0
    %267 = vmatprep.subr.mxu0 0.0
    %268 = vmatpush1.msra.mxu0 0.0
    %269 = vmatprep.subr.mxu0 0.0
    %270 = vmatpush1.msra.mxu0 0.0
    %271 = vmatprep.subr.mxu0 0.0
    %272 = vmatpush1.msra.mxu0 0.0
    %273 = vmatprep.subr.mxu0 0.0
    %274 = vmatpush1.msra.mxu0 0.0
    %275 = vmatprep.subr.mxu0 0.0
    %276 = vmatpush1.msra.mxu0 0.0
    %277 = vmatprep.subr.mxu0 0.0
    %278 = vmatpush1.msra.mxu0 0.0
    %279 = vmatprep.subr.mxu0 0.0
    %280 = vmatpush1.msra.mxu0 0.0
    %281 = vmatprep.subr.mxu0 0.0
    %282 = vmatpush1.msra.mxu0 0.0
    %283 = vmatprep.subr.mxu0 0.0
    %284 = vmatpush1.msra.mxu0 0.0
    %285 = vmatprep.subr.mxu0 0.0
    %286 = vmatpush1.msra.mxu0 0.0
    %287 = vmatprep.subr.mxu0 0.0
    %288 = vmatpush1.msra.mxu0 0.0
    %289 = vmatprep.subr.mxu0 0.0
    %290 = vmatpush1.msra.mxu0 0.0
    %291 = vmatprep.subr.mxu0 0.0
    %292 = vmatpush1.msra.mxu0 0.0
    %293 = vmatprep.subr.mxu0 0.0
    %294 = vmatpush1.msra.mxu0 0.0
    %295 = vmatprep.subr.mxu0 0.0
    %296 = vmatpush1.msra.mxu0 0.0
    %297 = vmatprep.mubr.f32.mxu0 0.0
    %298 = vmatmul.mubr.f32.gmra.mrb[0].mxu0 %v209
    %v299 = vpop.f32.mrb[0].mxu0
    %v300 = vadd.f32 %v231, %v299
    %v301 = vpop.f32.mrb[0].mxu0
    %302 = vdwg.mxu0
    %303 = vst [vmem:[#allocation2] sm:$0xff] %v300
    // Predicated region
    $region22: #{_lambda_.1} parent=1 // pred_check
      _
    $region23: #{_lambda_.1} parent=1 // pred_check_branch
      %305 = sbr.rel (0) target = $region25
    $region24: #{_lambda_.1} parent=1 // pred_region
      %s307 = ssub.s32 128, 128
      %308 = vsyncadd [#allocation3], %s307
      %s310 = sshll.u32 [#allocation2], 4
      %s311 = int_to_ptr.vmem [resolvable:$true] %s310
      %313 = dma.vmem_to_hbm [thread:$0]  %s311, 128, %s5, [#allocation3]
    $region25: #{_lambda_.1} parent=1 // pred_fallthru
      _
    // Predicated region
    $region26: #{_lambda_.1} parent=1 // pred_check
      _
    $region27: #{_lambda_.1} parent=1 // pred_check_branch
      %315 = sbr.rel (0) target = $region29
    $region28: #{_lambda_.1} parent=1 // pred_region
      %316 = dma.done [#allocation3], 128
    $region29: #{_lambda_.1} parent=1 // pred_fallthru
      _
    %317 = vsyncpa [#allocation3], 1

</llo_original>
